<compile_context>
chip_gen: v6e
topology: v6e:2x2x1
jax: 0.10.0
libtpu: 0.0.40
codegen_flags: <defaults>
</compile_context>

<pallas_src>
import functools
import math

import numpy as np

import jax
import jax.numpy as jnp
from jax import lax
from jax.experimental import pallas as pl
from jax.experimental.pallas import tpu as pltpu


# ----------------------------------------------------------------------------
# Helpers
# ----------------------------------------------------------------------------
def _compiler_params(dimension_semantics, vmem_estimate_bytes=None):
    kwargs = {"dimension_semantics": dimension_semantics}
    if vmem_estimate_bytes is not None:
        limit = int(vmem_estimate_bytes * 1.5)
        if limit > 32 * 1024 * 1024:          # above the scoped-VMEM default
            kwargs["vmem_limit_bytes"] = min(limit, 112 * 1024 * 1024)
    return pltpu.CompilerParams(**kwargs)


def _pick_row_tile(M, max_tile=512):
    if M <= max_tile:
        return M
    return max((max_tile // 16) * 16, 16)


def _pick_col_tile(d_out, max_tile=1024):
    # Last-dim block width must be a multiple of 128 unless it is the full dim.
    if d_out <= max_tile:
        return d_out
    for t in range(max_tile, 127, -128):
        if d_out % t == 0:
            return t
    return (max_tile // 128) * 128            # non-divisor; edge block padded


def _pick_contract_tile(d_in, max_tile=1024):
    # Contraction tile must divide d_in exactly (padded K garbage would
    # corrupt the accumulation) and be a multiple of 128 (x lane dim).
    if d_in <= max_tile:
        return d_in
    for t in range(max_tile, 127, -128):
        if d_in % t == 0:
            return t
    # TODO(synk): no aligned divisor of d_in -> keep the contraction un-tiled.
    return d_in


def _pick_q_tile(L, max_tile=512):
    if L <= max_tile:
        return L
    for t in range(max_tile, 15, -16):
        if L % t == 0:
            return t
    # TODO(synk): no aligned divisor of L -> fall back to full-L blocks.
    return L


def _pick_kv_tile(S, max_tile=1024):
    """Returns (Tk, needs_mask). needs_mask => cdiv grid + in-kernel masking."""
    if S <= max_tile:
        return S, False
    for t in range(max_tile, 15, -16):
        if S % t == 0:
            return t, False
    return max_tile, True


# ----------------------------------------------------------------------------
# Kernel 1: dense projection  y = x @ W + b
# Grid (M, N, K); x in f32 or bf16 (cast in-kernel), W bf16, accumulate in f32.
# ----------------------------------------------------------------------------
def _linear_kernel_fused(x_ref, w_ref, b_ref, o_ref):
    x = x_ref[...].astype(w_ref.dtype)        # in-kernel activation cast (VPU)
    acc = jnp.dot(x, w_ref[...], preferred_element_type=jnp.float32)
    o_ref[...] = (acc + b_ref[...]).astype(o_ref.dtype)


def _linear_kernel_acc(x_ref, w_ref, b_ref, o_ref, acc_ref):
    k = pl.program_id(2)

    @pl.when(k == 0)
    def _init():
        acc_ref[...] = jnp.zeros_like(acc_ref)

    x = x_ref[...].astype(w_ref.dtype)
    acc_ref[...] += jnp.dot(x, w_ref[...], preferred_element_type=jnp.float32)

    @pl.when(k == pl.num_programs(2) - 1)
    def _finalize():
        o_ref[...] = (acc_ref[...] + b_ref[...]).astype(o_ref.dtype)


def linear(x2d, w, b, *, out_dtype=jnp.float32, tm=512, tn_max=1024, tk_max=1024):
    """x2d: (M, d_in) f32/bf16, w: (d_in, d_out) bf16, b: (1, d_out) f32."""
    M, d_in = x2d.shape
    d_out = w.shape[1]
    tm = _pick_row_tile(M, tm)
    tn = _pick_col_tile(d_out, tn_max)
    tk = _pick_contract_tile(d_in, tk_max)
    nm, nn, nk = pl.cdiv(M, tm), pl.cdiv(d_out, tn), d_in // tk

    est = (2 * (tm * tk * x2d.dtype.itemsize
                + tk * tn * w.dtype.itemsize
                + tm * tn * np.dtype(out_dtype).itemsize)
           + tm * tn * 4 + 4 * tn * 4)

    if nk == 1:
        kernel, scratch = _linear_kernel_fused, []
    else:
        kernel, scratch = _linear_kernel_acc, [pltpu.VMEM((tm, tn), jnp.float32)]

    return pl.pallas_call(
        kernel,
        out_shape=jax.ShapeDtypeStruct((M, d_out), out_dtype),
        grid=(nm, nn, nk),
        in_specs=[
            pl.BlockSpec((tm, tk), lambda i, j, k: (i, k)),
            pl.BlockSpec((tk, tn), lambda i, j, k: (k, j)),
            pl.BlockSpec((1, tn), lambda i, j, k: (0, j)),
        ],
        out_specs=pl.BlockSpec((tm, tn), lambda i, j, k: (i, j)),
        scratch_shapes=scratch,
        compiler_params=_compiler_params(("parallel", "parallel", "arbitrary"), est),
    )(x2d, w, b)


# ----------------------------------------------------------------------------
# Kernel 2: multi-head attention with online softmax.
# Grid = (batch, head-group, q-block, kv-block); Q is pre-scaled by 1/sqrt(E).
# ----------------------------------------------------------------------------
def _mha_kernel(q_ref, k_ref, v_ref, o_ref, m_sc, l_sc, acc_sc,
                *, hb, E, Dv, kv_seq_len, needs_mask):
    kv_step = pl.program_id(3)

    @pl.when(kv_step == 0)
    def _init():
        m_sc[...] = jnp.full_like(m_sc, -jnp.inf)
        l_sc[...] = jnp.zeros_like(l_sc)
        acc_sc[...] = jnp.zeros_like(acc_sc)

    if needs_mask:
        Tk = k_ref.shape[0]
        off = kv_step * Tk
        col_valid = (off + lax.broadcasted_iota(jnp.int32, (1, Tk), 1)) < kv_seq_len
        row_valid = (off + lax.broadcasted_iota(jnp.int32, (Tk, 1), 0)) < kv_seq_len

    # Load the running statistics once per KV step; store once at the end
    # (avoids 2*hb width-1 masked stores per step -> store-slot relief).
    m_all = m_sc[...]                                        # (Tl, hb)
    l_all = l_sc[...]
    m_cols, l_cols = [], []

    # TODO(synk): consider lax.fori_loop(unroll=True) over heads to bound vreg
    # live ranges if hb grows large enough to spill.
    for h in range(hb):                                      # static, small
        q = q_ref[:, h * E:(h + 1) * E]                      # (Tl, E)  bf16 (pre-scaled)
        k = k_ref[:, h * E:(h + 1) * E]                      # (Tk, E)  bf16
        v = v_ref[:, h * Dv:(h + 1) * Dv]                    # (Tk, Dv) bf16
        # Contract on the last axes directly (no K transpose).
        s = lax.dot_general(q, k, (((1,), (1,)), ((), ())),
                            preferred_element_type=jnp.float32)  # (Tl, Tk) f32
        if needs_mask:
            s = jnp.where(col_valid, s, -jnp.inf)
            v = jnp.where(row_valid, v, jnp.zeros_like(v))

        m_prev = m_all[:, h:h + 1]                           # (Tl, 1)
        m_new = jnp.maximum(m_prev, jnp.max(s, axis=-1, keepdims=True))
        alpha = jnp.exp(m_prev - m_new)
        p = jnp.exp(s - m_new)                               # (Tl, Tk) f32

        m_cols.append(m_new)
        l_cols.append(alpha * l_all[:, h:h + 1]
                      + jnp.sum(p, axis=-1, keepdims=True))
        acc_sc[:, h * Dv:(h + 1) * Dv] = (
            alpha * acc_sc[:, h * Dv:(h + 1) * Dv]
            + jnp.dot(p.astype(v.dtype), v, preferred_element_type=jnp.float32))

    m_sc[...] = m_cols[0] if hb == 1 else jnp.concatenate(m_cols, axis=-1)
    l_sc[...] = l_cols[0] if hb == 1 else jnp.concatenate(l_cols, axis=-1)

    @pl.when(kv_step == pl.num_programs(3) - 1)
    def _finalize():
        l_fin = l_sc[...]
        for h in range(hb):
            inv = pl.reciprocal(l_fin[:, h:h + 1], approx=False)
            acc_sc[:, h * Dv:(h + 1) * Dv] = acc_sc[:, h * Dv:(h + 1) * Dv] * inv
        # Single lane-dense (Tl, hb*Dv) store straight from scratch.
        o_ref[...] = acc_sc[...].astype(o_ref.dtype)


def _pick_heads_per_block(H, E, Dv, in_last_dims, out_last_dim):
    """Head group size giving layout-legal, lane-dense blocks.

    Prefers hb*Dv in [256, 512] (fills the 256-wide MXU on v6e/v7x), then
    >=128 lanes, then the widest legal group.
    """
    q_last, k_last, v_last = in_last_dims

    def lane_ok(w, full):
        return w == full or w % 128 == 0

    cands = [hb for hb in range(1, H + 1)
             if H % hb == 0
             and lane_ok(hb * E, q_last) and lane_ok(hb * E, k_last)
             and lane_ok(hb * Dv, v_last) and lane_ok(hb * Dv, out_last_dim)]
    if not cands:
        return None
    pref = [hb for hb in cands if 256 <= hb * Dv <= 512]
    if pref:
        return min(pref)
    dense = [hb for hb in cands if hb * Dv >= 128]
    if dense:
        return min(dense)
    return max(cands)


def multi_head_attention(q_arr, k_arr, v_arr, *, n_heads, d_keys, d_values,
                         q_lane_off=0, k_lane_off=0, v_lane_off=0,
                         out_dtype=jnp.bfloat16, q_tile=512, kv_tile=1024):
    """q_arr: (N, L, >=H*E), k_arr: (N, S, >=H*E), v_arr: (N, S, >=H*Dv).

    Q must already carry the 1/sqrt(E) scale (folded into the projection).
    The three inputs may be the *same* fused projection array; `*_lane_off`
    gives the lane offset of Q/K/V inside it (head indexing is folded into
    the BlockSpec index maps, so no slicing copies are needed).
    """
    H, E, Dv = n_heads, d_keys, d_values
    N, L, _ = q_arr.shape
    S = k_arr.shape[1]

    hb = _pick_heads_per_block(
        H, E, Dv, (q_arr.shape[-1], k_arr.shape[-1], v_arr.shape[-1]), H * Dv)
    aligned = (hb is not None
               and q_lane_off % (hb * E) == 0
               and k_lane_off % (hb * E) == 0
               and v_lane_off % (hb * Dv) == 0)
    if not aligned:
        # Fall back: materialise per-tensor views so block width == full lane
        # extent (always layout-legal).  Only needed at tiny head dims.
        q_arr = lax.slice_in_dim(q_arr, q_lane_off, q_lane_off + H * E, axis=2)
        k_arr = lax.slice_in_dim(k_arr, k_lane_off, k_lane_off + H * E, axis=2)
        v_arr = lax.slice_in_dim(v_arr, v_lane_off, v_lane_off + H * Dv, axis=2)
        q_lane_off = k_lane_off = v_lane_off = 0
        hb = _pick_heads_per_block(H, E, Dv, (H * E, H * E, H * Dv), H * Dv)

    G = H // hb
    Tl = _pick_q_tile(L, q_tile)
    Tk, needs_mask = _pick_kv_tile(S, kv_tile)
    n_l = pl.cdiv(L, Tl)
    n_kv = pl.cdiv(S, Tk)
    q_off = q_lane_off // (hb * E)
    k_off = k_lane_off // (hb * E)
    v_off = v_lane_off // (hb * Dv)

    kernel = functools.partial(_mha_kernel, hb=hb, E=E, Dv=Dv,
                               kv_seq_len=S, needs_mask=needs_mask)

    ob = np.dtype(out_dtype).itemsize
    est = (2 * (Tl * hb * E * q_arr.dtype.itemsize
                + Tk * hb * E * k_arr.dtype.itemsize
                + Tk * hb * Dv * v_arr.dtype.itemsize
                + Tl * hb * Dv * ob)
           + Tl * hb * (2 + Dv) * 4          # m/l/acc scratch
           + 3 * Tl * Tk * 4)                # s/p temporaries headroom

    return pl.pallas_call(
        kernel,
        out_shape=jax.ShapeDtypeStruct((N, L, H * Dv), out_dtype),
        grid=(N, G, n_l, n_kv),
        in_specs=[
            pl.BlockSpec((None, Tl, hb * E),
                         lambda n, g, l, kv, o=q_off: (n, l, o + g)),
            pl.BlockSpec((None, Tk, hb * E),
                         lambda n, g, l, kv, o=k_off: (n, kv, o + g)),
            pl.BlockSpec((None, Tk, hb * Dv),
                         lambda n, g, l, kv, o=v_off: (n, kv, o + g)),
        ],
        out_specs=pl.BlockSpec((None, Tl, hb * Dv),
                               lambda n, g, l, kv: (n, l, g)),
        scratch_shapes=[
            pltpu.VMEM((Tl, hb), jnp.float32),        # running max
            pltpu.VMEM((Tl, hb), jnp.float32),        # running denominator
            pltpu.VMEM((Tl, hb * Dv), jnp.float32),   # running output acc
        ],
        compiler_params=_compiler_params(
            ("parallel", "parallel", "parallel", "arbitrary"), est),
    )(q_arr, k_arr, v_arr)


# ----------------------------------------------------------------------------
# One-time parameter preparation (fused / pre-cast weights, scale folding)
# ----------------------------------------------------------------------------
def prepare_params(params, n_heads, compute_dtype=jnp.bfloat16):
    H = n_heads
    E = params["wq"].shape[1] // H
    Dv = params["wv"].shape[1] // H
    scale = 1.0 / math.sqrt(E)
    wq_s = params["wq"] * scale                      # fold 1/sqrt(E) into Q proj
    bq_s = params["bq"] * scale
    f32 = jnp.float32
    return {
        "H": H, "E": E, "Dv": Dv,
        # separate projections (Q pre-scaled)
        "wq": wq_s.astype(compute_dtype), "bq": bq_s.astype(f32),
        "wk": params["wk"].astype(compute_dtype), "bk": params["bk"].astype(f32),
        "wv": params["wv"].astype(compute_dtype), "bv": params["bv"].astype(f32),
        "wo": params["wo"].astype(compute_dtype), "bo": params["bo"].astype(f32),
        # fused QKV (self-attention)
        "w_qkv": jnp.concatenate([wq_s, params["wk"], params["wv"]],
                                 axis=1).astype(compute_dtype),
        "b_qkv": jnp.concatenate([bq_s, params["bk"], params["bv"]],
                                 axis=1).astype(f32),
        # fused KV (keys is values)
        "w_kv": jnp.concatenate([params["wk"], params["wv"]],
                                axis=1).astype(compute_dtype),
        "b_kv": jnp.concatenate([params["bk"], params["bv"]],
                                axis=1).astype(f32),
    }


# ----------------------------------------------------------------------------
# AttentionLayer forward (JAX glue around the Pallas kernels)
# ----------------------------------------------------------------------------
def attention_layer_forward(prep, queries, keys, values, *, mode="auto"):
    H, E, Dv = prep["H"], prep["E"], prep["Dv"]
    N, L, d_model = queries.shape
    S = keys.shape[1]
    bf = prep["wq"].dtype

    if mode == "auto":
        # NOTE: identity checks may not fire under jit tracing; pass `mode`
        # explicitly there to keep the fused-projection fast paths.
        if queries is keys and keys is values:
            mode = "self"
        elif keys is values:
            mode = "cross_kv"
        else:
            mode = "cross"

    if mode == "self":
        qkv = linear(queries.reshape(N * L, d_model), prep["w_qkv"],
                     prep["b_qkv"], out_dtype=bf).reshape(N, L, H * (2 * E + Dv))
        q_arr = k_arr = v_arr = qkv
        offs = (0, H * E, 2 * H * E)
    elif mode == "cross_kv":
        q_arr = linear(queries.reshape(N * L, d_model), prep["wq"],
                       prep["bq"], out_dtype=bf).reshape(N, L, H * E)
        kv = linear(keys.reshape(N * S, d_model), prep["w_kv"],
                    prep["b_kv"], out_dtype=bf).reshape(N, S, H * (E + Dv))
        k_arr = v_arr = kv
        offs = (0, 0, H * E)
    else:
        q_arr = linear(queries.reshape(N * L, d_model), prep["wq"],
                       prep["bq"], out_dtype=bf).reshape(N, L, H * E)
        k_arr = linear(keys.reshape(N * S, d_model), prep["wk"],
                       prep["bk"], out_dtype=bf).reshape(N, S, H * E)
        v_arr = linear(values.reshape(N * S, d_model), prep["wv"],
                       prep["bv"], out_dtype=bf).reshape(N, S, H * Dv)
        offs = (0, 0, 0)

    attn = multi_head_attention(
        q_arr, k_arr, v_arr, n_heads=H, d_keys=E, d_values=Dv,
        q_lane_off=offs[0], k_lane_off=offs[1], v_lane_off=offs[2],
        out_dtype=bf)                                     # (N, L, H*Dv)

    # (N, L, H*Dv) -> (N*L, H*Dv) is a free view (no transpose needed).
    y = linear(attn.reshape(N * L, H * Dv), prep["wo"], prep["bo"],
               out_dtype=jnp.float32)
    return y.reshape(N, L, d_model)


# ----------------------------------------------------------------------------
# Deterministic parameter init (PyTorch nn.Linear-style uniform +/- 1/sqrt(in))
# ----------------------------------------------------------------------------
def init_params(key, d_model, n_heads, d_keys=None, d_values=None):
    d_keys = d_keys or d_model // n_heads
    d_values = d_values or d_model // n_heads

    def lin_init(k, d_in, d_out):
        k1, k2 = jax.random.split(k)
        bound = 1.0 / math.sqrt(d_in)
        w = jax.random.uniform(k1, (d_in, d_out), jnp.float32, -bound, bound)
        b = jax.random.uniform(k2, (1, d_out), jnp.float32, -bound, bound)
        return w, b

    ks = jax.random.split(key, 4)
    wq, bq = lin_init(ks[0], d_model, d_keys * n_heads)
    wk, bk = lin_init(ks[1], d_model, d_keys * n_heads)
    wv, bv = lin_init(ks[2], d_model, d_values * n_heads)
    wo, bo = lin_init(ks[3], d_values * n_heads, d_model)
    return {"wq": wq, "bq": bq, "wk": wk, "bk": bk,
            "wv": wv, "bv": bv, "wo": wo, "bo": bo}


# ----------------------------------------------------------------------------
# Pure-JAX f32 reference for sanity checking
# ----------------------------------------------------------------------------
def reference_forward(params, queries, keys, values, n_heads):
    N, L, d_model = queries.shape
    _, S, _ = keys.shape
    H = n_heads
    q = queries @ params["wq"] + params["bq"]
    k = keys @ params["wk"] + params["bk"]
    v = values @ params["wv"] + params["bv"]
    E = q.shape[-1] // H
    Dv = v.shape[-1] // H
    q = q.reshape(N, L, H, E)
    k = k.reshape(N, S, H, E)
    v = v.reshape(N, S, H, Dv)
    s = jnp.einsum("nlhe,nshe->nhls", q, k) / math.sqrt(E)
    p = jax.nn.softmax(s, axis=-1)
    o = jnp.einsum("nhls,nshd->nlhd", p, v).reshape(N, L, H * Dv)
    return (o @ params["wo"] + params["bo"]).reshape(N, L, d_model)


if __name__ == "__main__":
    root = jax.random.PRNGKey(0)

    def run_case(name, d_model, n_heads, N, L, S, self_attn, share_kv, key):
        kp, kq, kk, kvv = jax.random.split(key, 4)
        params = init_params(kp, d_model, n_heads)
        prep = prepare_params(params, n_heads)        # one-time fuse/cast
        x = jax.random.normal(kq, (N, L, d_model), jnp.float32)
        if self_attn:
            queries = keys = values = x
        else:
            queries = x
            keys = jax.random.normal(kk, (N, S, d_model), jnp.float32)
            values = keys if share_kv else jax.random.normal(
                kvv, (N, S, d_model), jnp.float32)
        out = attention_layer_forward(prep, queries, keys, values)
        out = jax.block_until_ready(out)
        ref = reference_forward(params, queries, keys, values, n_heads)
        assert out.shape == ref.shape
        assert jnp.allclose(out, ref, atol=7.5e-2, rtol=7.5e-2), (
            f"{name}: max abs err {jnp.max(jnp.abs(out - ref))}")

    k1, k2, k3, k4 = jax.random.split(root, 4)
    # self-attention (fused QKV projection), tiny heads -> fallback slicing path
    run_case("self_small", 32, 4, 2, 8, 8, True, False, k1)
    # cross-attention with keys is values (fused KV projection)
    run_case("cross_shared_kv", 32, 4, 2, 8, 16, False, True, k2)
    # cross-attention with distinct keys / values (separate projections)
    run_case("cross_separate", 32, 4, 2, 8, 16, False, False, k3)
    # self-attention with head_dim=128 -> fused QKV fed to attention via
    # BlockSpec lane offsets, 256-lane (MXU-filling) output blocks
    run_case("self_lane_dense", 256, 2, 1, 8, 8, True, False, k4)

    print("KERNEL_OK")
</pallas_src>

<mosaic_0001>
module attributes {stable_mosaic.version = 11 : i64} {
  func.func @_linear_kernel_fused(%arg0: i32, %arg1: i32, %arg2: i32, %arg3: memref<16x32xf32, #tpu.memory_space<vmem>>, %arg4: memref<32x96xbf16, #tpu.memory_space<vmem>>, %arg5: memref<1x96xf32, #tpu.memory_space<vmem>>, %arg6: memref<16x96xbf16, #tpu.memory_space<vmem>>) attributes {dimension_semantics = [#tpu.dimension_semantics<parallel>, #tpu.dimension_semantics<parallel>, #tpu.dimension_semantics<arbitrary>], iteration_bounds = array<i64: 1, 1, 1>, scalar_prefetch = 0 : i64, scratch_operands = 0 : i64, tpu.core_type = #tpu.core_type<tc>, window_params = [{transform_indices = @transform_0, window_bounds = array<i64: 16, 32>}, {transform_indices = @transform_1, window_bounds = array<i64: 32, 96>}, {transform_indices = @transform_2, window_bounds = array<i64: 1, 96>}, {transform_indices = @transform_3, window_bounds = array<i64: 16, 96>}]} {
    %c0 = arith.constant 0 : index
    %c0_0 = arith.constant 0 : index
    %0 = vector.load %arg3[%c0, %c0_0] : memref<16x32xf32, #tpu.memory_space<vmem>>, vector<16x32xf32>
    %1 = arith.truncf %0 : vector<16x32xf32> to vector<16x32xbf16>
    %c0_1 = arith.constant 0 : index
    %c0_2 = arith.constant 0 : index
    %2 = vector.load %arg4[%c0_1, %c0_2] : memref<32x96xbf16, #tpu.memory_space<vmem>>, vector<32x96xbf16>
    %cst = arith.constant dense<0.000000e+00> : vector<16x96xf32>
    %3 = tpu.matmul %1, %2, %cst {dimension_numbers = #tpu.dot_dimension_numbers<[1], [0], [0], [1], [0, 0, 1, 1], [], []>} : vector<16x32xbf16>, vector<32x96xbf16>, vector<16x96xf32> -> vector<16x96xf32>
    %c0_3 = arith.constant 0 : index
    %c0_4 = arith.constant 0 : index
    %4 = vector.load %arg5[%c0_3, %c0_4] : memref<1x96xf32, #tpu.memory_space<vmem>>, vector<1x96xf32>
    %5 = vector.broadcast %4 : vector<1x96xf32> to vector<16x96xf32>
    %6 = arith.addf %3, %5 : vector<16x96xf32>
    %7 = arith.truncf %6 : vector<16x96xf32> to vector<16x96xbf16>
    %c0_5 = arith.constant 0 : index
    %c0_6 = arith.constant 0 : index
    %8 = vector.load %arg6[%c0_5, %c0_6] : memref<16x96xbf16, #tpu.memory_space<vmem>>, vector<16x96xbf16>
    tpu.vector_store %arg6[%c0_5, %c0_6], %7 {strides = array<i32>} : memref<16x96xbf16, #tpu.memory_space<vmem>>, vector<16x96xbf16>,
    return
  }
  func.func @transform_0(%arg0: i32, %arg1: i32, %arg2: i32) -> (i32, i32) {
    %c0_i32 = arith.constant 0 : i32
    return %arg0, %arg2 : i32, i32
  }
  func.func @transform_1(%arg0: i32, %arg1: i32, %arg2: i32) -> (i32, i32) {
    %c0_i32 = arith.constant 0 : i32
    return %arg2, %arg1 : i32, i32
  }
  func.func @transform_2(%arg0: i32, %arg1: i32, %arg2: i32) -> (i32, i32) {
    %c0_i32 = arith.constant 0 : i32
    %c0_i32_0 = arith.constant 0 : i32
    return %c0_i32, %arg1 : i32, i32
  }
  func.func @transform_3(%arg0: i32, %arg1: i32, %arg2: i32) -> (i32, i32) {
    %c0_i32 = arith.constant 0 : i32
    return %arg0, %arg1 : i32, i32
  }
}

</mosaic_0001>

<llo_original>
// kernel: tpu_custom_call.1
$region0: #{tpu_custom_call.1}
  #allocation0 [shape = 'u32[]', space=smem, size = 0x4, offset = 0x4, fixed_abs, tag = 'smem constant byte address 0x4 - core index']
  #allocation1 [shape = 'u32[144,128]{1,0:T(1,128)}', space=vmem, size = 0x12000, scoped, tag = 'internal scratch']
  %s0 = inlined_call_operand.hbm [shape: f32[16,32], index: 0, kind: input, shape index: {}]
  %s1 = inlined_call_operand.hbm [shape: bf16[32,96], index: 1, kind: input, shape index: {}]
  %s2 = inlined_call_operand.vmem [shape: f32[1,96], index: 2, kind: input, shape index: {}]
  %s3 = inlined_call_operand.hbm [shape: bf16[16,96], index: 3, kind: output, shape index: {}]
  %s4 = sld [smem:[#allocation0]]
  $region30: #{tpu_custom_call.1} parent=0
    _
  %s6 = ssub.s32 1, %s4
  %s7 = scalar_select 0, %s6, %s4
  $region1: #{tpu_custom_call.1} parent=0
    #allocation2 [shape = 'u8[8192]{0}', space=vmem, size = 0x2000, scoped, tag = 'input window, operand 0, single buffered']
    #allocation3 [shape = 's32[1]{0}', space=sflag, size = 0x4, scoped, tag = 'scoped memory for tpu_custom_call.1']
    #allocation4 [shape = 's32[1]{0}', space=sflag, size = 0x4, scoped, tag = 'scoped memory for tpu_custom_call.1']
    #allocation5 [shape = 'u8[8192]{0}', space=vmem, size = 0x2000, scoped, tag = 'input window, operand 1, single buffered']
    #allocation6 [shape = 's32[1]{0}', space=sflag, size = 0x4, scoped, tag = 'scoped memory for tpu_custom_call.1']
    #allocation7 [shape = 'u8[4096]{0}', space=vmem, size = 0x1000, scoped, tag = 'output window, operand 0, single buffered']
    %8 = vsyncpa [#allocation3], 0
    %9 = vsyncpa [#allocation6], 0
    %10 = vsyncpa [#allocation4], 0
    // Predicated region
    $region2: #{tpu_custom_call.1} parent=1 // pred_check
      _
    $region3: #{tpu_custom_call.1} parent=1 // pred_check_branch
      %12 = sbr.rel (0) target = $region5
    $region4: #{tpu_custom_call.1} parent=1 // pred_region
      %s14 = ssub.s32 256, 256
      %15 = vsyncadd [#allocation3], %s14
      %s16 = sshll.u32 [#allocation2], 4
      %s17 = int_to_ptr.vmem [resolvable:$true] %s16
      %22 = dma.hbm_to_vmem [thread:$0]  %s0, 256, %s17, [#allocation3], 128, 128, 8
    $region5: #{tpu_custom_call.1} parent=1 // pred_fallthru
      _
    // Predicated region
    $region6: #{tpu_custom_call.1} parent=1 // pred_check
      _
    $region7: #{tpu_custom_call.1} parent=1 // pred_check_branch
      %24 = sbr.rel (0) target = $region9
    $region8: #{tpu_custom_call.1} parent=1 // pred_region
      %s26 = ssub.s32 256, 256
      %27 = vsyncadd [#allocation6], %s26
      %s28 = sshll.u32 [#allocation5], 4
      %s29 = int_to_ptr.vmem [resolvable:$true] %s28
      %34 = dma.hbm_to_vmem [thread:$0]  %s1, 256, %s29, [#allocation6], 64, 64, 4
    $region9: #{tpu_custom_call.1} parent=1 // pred_fallthru
      _
    // Predicated region
    $region10: #{tpu_custom_call.1} parent=1 // pred_check
      _
    $region11: #{tpu_custom_call.1} parent=1 // pred_check_branch
      %36 = sbr.rel (0) target = $region13
    $region12: #{tpu_custom_call.1} parent=1 // pred_region
      _
    $region13: #{tpu_custom_call.1} parent=1 // pred_fallthru
      _
    // Predicated region
    $region14: #{tpu_custom_call.1} parent=1 // pred_check
      _
    $region15: #{tpu_custom_call.1} parent=1 // pred_check_branch
      %38 = sbr.rel (0) target = $region17
    $region16: #{tpu_custom_call.1} parent=1 // pred_region
      %39 = dma.done [#allocation3], 256
    $region17: #{tpu_custom_call.1} parent=1 // pred_fallthru
      _
    // Predicated region
    $region18: #{tpu_custom_call.1} parent=1 // pred_check
      _
    $region19: #{tpu_custom_call.1} parent=1 // pred_check_branch
      %41 = sbr.rel (0) target = $region21
    $region20: #{tpu_custom_call.1} parent=1 // pred_region
      %42 = dma.done [#allocation6], 256
    $region21: #{tpu_custom_call.1} parent=1 // pred_fallthru
      _
    %v44 = vld [vmem:[#allocation2] sm:$0xff]
    %v45 = vld [vmem:[#allocation2 + $0x8] sm:$0xff]
    %v46 = vpack.c.bf16 %v45, %v44
    %v47 = vld [vmem:[#allocation5] sm:$0xf]
    %v48 = vld [vmem:[#allocation5 + $0x4] sm:$0xf]
    %v49 = vld [vmem:[#allocation5 + $0x8] sm:$0xf]
    %v50 = vld [vmem:[#allocation5 + $0xc] sm:$0xf]
    %v51 = vld [vmem:[%s2] sm:$0x1]
    %v53 = vlaneseq
    %v54 = vshrl.u32 %v53, 7
    %v55 = vsub.s32 0, %v54
    %v56 = vrot.slane %v51, %v55
    %v62 = vunpack.c.l.b16 %v47
    %v63 = vunpack.c.l.b16 %v48
    %v64 = vunpack.c.l.b16 %v49
    %v65 = vunpack.c.l.b16 %v50
    %v66 = vpack.c.b16 %v63, %v62
    %v67 = vpack.c.b16 %v65, %v64
    %vm70 = vcmask 261120
    %v72 = vsel %vm70, %v46, 0
    %74 = vmatprep.subr.bf16.mxu0 0
    %75 = vmatpush1.bf16.msra.mxu0 0
    %76 = vmatprep.subr.bf16.mxu0 0
    %77 = vmatpush1.bf16.msra.mxu0 0
    %78 = vmatprep.subr.bf16.mxu0 0
    %79 = vmatpush1.bf16.msra.mxu0 0
    %80 = vmatprep.subr.bf16.mxu0 0
    %81 = vmatpush1.bf16.msra.mxu0 0
    %82 = vmatprep.subr.bf16.mxu0 0
    %83 = vmatpush1.bf16.msra.mxu0 0
    %84 = vmatprep.subr.bf16.mxu0 0
    %85 = vmatpush1.bf16.msra.mxu0 0
    %86 = vmatprep.subr.bf16.mxu0 0
    %87 = vmatpush1.bf16.msra.mxu0 %v67
    %88 = vmatprep.subr.bf16.mxu0 0
    %89 = vmatpush1.bf16.msra.mxu0 %v66
    %90 = vmatprep.subr.bf16.mxu0 0
    %91 = vmatpush2.bf16.msra.mxu0 0
    %92 = vmatprep.subr.bf16.mxu0 0
    %93 = vmatpush2.bf16.msra.mxu0 0
    %94 = vmatprep.subr.bf16.mxu0 0
    %95 = vmatpush2.bf16.msra.mxu0 0
    %96 = vmatprep.subr.bf16.mxu0 0
    %97 = vmatpush2.bf16.msra.mxu0 0
    %98 = vmatprep.subr.bf16.mxu0 0
    %99 = vmatpush2.bf16.msra.mxu0 0
    %100 = vmatprep.subr.bf16.mxu0 0
    %101 = vmatpush2.bf16.msra.mxu0 0
    %102 = vmatprep.subr.bf16.mxu0 0
    %103 = vmatpush2.bf16.msra.mxu0 0
    %104 = vmatprep.subr.bf16.mxu0 0
    %105 = vmatpush2.bf16.msra.mxu0 0
    %106 = vmatprep.mubr.bf16.mxu0 0
    %107 = vmatmul.mubr.bf16.gmra.mxu0 %v72
    %v108 = vpop.f32.mrf.mxu0
    %v109 = vadd.f32 %v56, %v108
    %v110 = vpop.f32.mrf.mxu0
    %v111 = vpop.f32.mrf.mxu0
    %v112 = vadd.f32 %v56, %v111
    %v113 = vpop.f32.mrf.mxu0
    %114 = vdwg.mxu0
    %v115 = vpack.c.bf16 %v112, %v109
    %v117 = vunpack.c.l.b16 %v115
    %v118 = vunpack.c.h.b16 %v115
    %v119 = vpack.c.b16 %v117, %v117
    %v120 = vpack.c.b16 %v118, %v118
    %vm123 = vcmask 781312
    %124 = vst.msk [vmem:[#allocation7] sm:$0xf] %vm123, %v119
    %125 = vst.msk [vmem:[#allocation7 + $0x4] sm:$0xf] %vm123, %v120
    // Predicated region
    $region22: #{tpu_custom_call.1} parent=1 // pred_check
      _
    $region23: #{tpu_custom_call.1} parent=1 // pred_check_branch
      %127 = sbr.rel (0) target = $region25
    $region24: #{tpu_custom_call.1} parent=1 // pred_region
      %s129 = ssub.s32 128, 128
      %130 = vsyncadd [#allocation4], %s129
      %s131 = sshll.u32 [#allocation7], 4
      %s132 = int_to_ptr.vmem [resolvable:$true] %s131
      %137 = dma.vmem_to_hbm [thread:$0]  %s132, 128, %s3, [#allocation4], 64, 64, 4
    $region25: #{tpu_custom_call.1} parent=1 // pred_fallthru
      _
    // Predicated region
    $region26: #{tpu_custom_call.1} parent=1 // pred_check
      _
    $region27: #{tpu_custom_call.1} parent=1 // pred_check_branch
      %139 = sbr.rel (0) target = $region29
    $region28: #{tpu_custom_call.1} parent=1 // pred_region
      %140 = dma.done [#allocation4], 128
    $region29: #{tpu_custom_call.1} parent=1 // pred_fallthru
      _
    %141 = vsyncpa [#allocation3], 1
    %142 = vsyncpa [#allocation6], 1
    %143 = vsyncpa [#allocation4], 1

</llo_original>
